<compile_context>
chip_gen: v6e
topology: v6e:2x2x1
jax: 0.10.0
libtpu: 0.0.40
codegen_flags: <defaults>
</compile_context>

<pallas_src>
import functools

import jax
import jax.numpy as jnp
from jax.experimental import pallas as pl
from jax.experimental.pallas import tpu as pltpu


def _word_kv_kernel(h_ref, ea_ref, ec_ref, mask_ref, w1_ref, w2_ref, b_ref,
                    out_ref, *, embed_size, no_txtnorm):
    f32 = jnp.float32
    cdt = jnp.bfloat16  # MXU-native operand dtype; accumulation stays f32.

    h = h_ref[...]                                         # (Bt, S, H)
    ea = ea_ref[...]                                       # (Bt, L, H)
    ec = ec_ref[...]                                       # (Bt, L, H)
    m = jnp.clip(mask_ref[...].astype(f32), 0.0, 1.0)      # (Bt, S, L)

    h_c = h.astype(cdt)

    # u[b,s,l] = <h[b,s], ea[b,l]>  == hidden_state @ embedding_a^T
    u = jnp.einsum("bsh,blh->bsl", h_c, ea.astype(cdt),
                   preferred_element_type=f32)             # (Bt, S, L) f32

    # Masked softmax over L.  Row-max (clamped at 0) subtraction for exp
    # overflow safety; the epsilon is rescaled by exp(-umax) so this equals
    # delta / (sum + 1e-10) of the original formula exactly.
    u_max = jnp.maximum(jnp.max(u, axis=-1, keepdims=True), 0.0)
    delta = jnp.exp(u - u_max) * m
    denom = jnp.sum(delta, axis=-1, keepdims=True) + 1e-10 * jnp.exp(-u_max)
    p = delta * pl.reciprocal(denom, approx=True)          # (Bt, S, L)

    # o_att[b,s,:] = sum_l p[b,s,l] * ec[b,l,:]
    o_att = jnp.einsum("bsl,blh->bsh", p.astype(cdt), ec.astype(cdt),
                       preferred_element_type=f32)         # (Bt, S, H) f32

    # fc(concat([h, o_att], -1)) == h @ W1 + o_att @ W2 + b (no concat copy).
    # Flatten (Bt, S, H) -> (Bt*S, H): H stays last, layout-free, and gives
    # the MXU Bt*S rows per pass instead of S.
    bt, s, hdim = h.shape
    rows = bt * s
    hf = h_c.reshape(rows, hdim)
    af = o_att.astype(cdt).reshape(rows, hdim)

    o = (jax.lax.dot_general(hf, w1_ref[...].astype(cdt),
                             (((1,), (0,)), ((), ())),
                             preferred_element_type=f32)
         + jax.lax.dot_general(af, w2_ref[...].astype(cdt),
                               (((1,), (0,)), ((), ())),
                               preferred_element_type=f32)
         + b_ref[...].astype(f32))                         # (rows, Ep)

    if not no_txtnorm:                                     # l2norm(o + 1e-10)
        o = o + 1e-10
        # Norm only over the real E columns (padded lanes are dropped later).
        ssq = jnp.sum(jnp.square(o[:, :embed_size]), axis=-1, keepdims=True)
        norm = jnp.sqrt(ssq) + 1e-8
        o = o * pl.reciprocal(norm, approx=True)

    out_ref[...] = o.reshape(bt, s, -1).astype(out_ref.dtype)


def _round_up(x, m):
    return (x + m - 1) // m * m


def _pick_batch_tile(batch, seq, cap_len, hidden, embed_pad,
                     vmem_budget_bytes=8 << 20):
    """Largest divisor of `batch` whose double-buffered block fits the budget
    (sized conservatively for v7x's smaller VMEM) and gives >=256 MXU rows."""
    per_b = 4 * (seq * hidden + 2 * cap_len * hidden
                 + seq * cap_len + seq * embed_pad)
    best = 1
    for bt in range(1, batch + 1):
        if batch % bt:
            continue
        if 2 * bt * per_b > vmem_budget_bytes:
            break
        best = bt
        if bt * seq >= 256:
            break
    return best


def prepare_word_kv_params(emb_a_w, emb_c_w, fc_w, fc_b, *,
                           compute_dtype=jnp.bfloat16):
    """One-time weight prep, hoisted out of the per-call path:
    transpose torch's (E, 2H) Linear weight, split into the hidden / memory
    halves, pre-cast to bf16 for the MXU, and pad E up to a multiple of 128
    so the kernel's output store is lane-dense."""
    hidden = emb_a_w.shape[1]
    embed = fc_w.shape[0]
    embed_pad = embed if embed % 128 == 0 else _round_up(embed, 128)
    w_t = fc_w.T                                           # (2H, E)
    w1 = w_t[:hidden].astype(compute_dtype)                # (H, E) hidden half
    w2 = w_t[hidden:].astype(compute_dtype)                # (H, E) memory half
    b = fc_b.astype(jnp.float32)
    if embed_pad != embed:
        w1 = jnp.pad(w1, ((0, 0), (0, embed_pad - embed)))
        w2 = jnp.pad(w2, ((0, 0), (0, embed_pad - embed)))
        b = jnp.pad(b, (0, embed_pad - embed))
    return {"emb_a_w": emb_a_w, "emb_c_w": emb_c_w,
            "fc_w1": w1, "fc_w2": w2, "fc_b": b.reshape(1, embed_pad),
            "embed_size": int(embed)}


def word_kv_memory_forward(params, captions, hidden_state, targets_feature,
                           feature_mask, *, no_txtnorm=False,
                           out_dtype=jnp.float32):
    """Pallas-backed equivalent of word_kv_memory.forward(...)."""
    # Data-dependent nn.Embedding gathers stay in the wrapper (XLA gather).
    emb_a = jnp.take(params["emb_a_w"], captions, axis=0)         # (B, L, H)
    emb_c = jnp.take(params["emb_c_w"], targets_feature, axis=0)  # (B, L, H)

    B, S, H = hidden_state.shape
    L = captions.shape[1]
    E = params["embed_size"]
    Ep = params["fc_w1"].shape[1]

    bt = _pick_batch_tile(B, S, L, H, Ep)
    kernel = functools.partial(_word_kv_kernel, embed_size=E,
                               no_txtnorm=bool(no_txtnorm))

    out = pl.pallas_call(
        kernel,
        out_shape=jax.ShapeDtypeStruct((B, S, Ep), out_dtype),
        grid=(B // bt,),
        in_specs=[
            pl.BlockSpec((bt, S, H), lambda b: (b, 0, 0)),   # hidden_state
            pl.BlockSpec((bt, L, H), lambda b: (b, 0, 0)),   # emb_a(captions)
            pl.BlockSpec((bt, L, H), lambda b: (b, 0, 0)),   # emb_c(targets)
            pl.BlockSpec((bt, S, L), lambda b: (b, 0, 0)),   # feature_mask
            pl.BlockSpec((H, Ep), lambda b: (0, 0)),         # fc W hidden half
            pl.BlockSpec((H, Ep), lambda b: (0, 0)),         # fc W memory half
            pl.BlockSpec((1, Ep), lambda b: (0, 0)),         # fc bias
        ],
        out_specs=pl.BlockSpec((bt, S, Ep), lambda b: (b, 0, 0)),
        compiler_params=pltpu.CompilerParams(
            dimension_semantics=("parallel",)),
    )(hidden_state, emb_a, emb_c, feature_mask,
      params["fc_w1"], params["fc_w2"], params["fc_b"])

    return out[..., :E] if Ep != E else out


def _reference_forward(raw, captions, hidden_state, targets_feature,
                       feature_mask, *, no_txtnorm=False):
    """Plain-JAX f32 reference mirroring the PyTorch forward exactly."""
    hp = jax.lax.Precision.HIGHEST
    emb_a = raw["emb_a_w"][captions]                       # (B, L, H)
    emb_c = raw["emb_c_w"][targets_feature]                # (B, L, H)
    u = jnp.einsum("bsh,blh->bsl", hidden_state, emb_a, precision=hp)
    mask = jnp.clip(feature_mask, 0.0, 1.0)
    delta = jnp.exp(u) * mask
    s = jnp.sum(delta, axis=2, keepdims=True)
    p = delta / (s + 1e-10)
    o = jnp.einsum("bsl,blh->bsh", p, emb_c, precision=hp)
    o = jnp.concatenate([hidden_state, o], axis=2)
    o = jnp.einsum("bsk,ek->bse", o, raw["fc_w"], precision=hp) + raw["fc_b"]
    if not no_txtnorm:
        o = o + 1e-10
        norm = jnp.sqrt(jnp.sum(o ** 2, axis=-1, keepdims=True)) + 1e-8
        o = o / norm
    return o


if __name__ == "__main__":
    # opt: vocab_size=50, feature_size=40, hidden_size=32, embed_size=32,
    #      no_txtnorm=False.   Demo shapes: batch=2, seq=8, caption_len=8.
    vocab_size, feature_size = 50, 40
    H, E = 32, 32
    B, S, L = 2, 8, 8

    key = jax.random.PRNGKey(0)
    k = jax.random.split(key, 7)
    r = (6.0 ** 0.5) / float((2 * H + E) ** 0.5)

    raw = {
        "emb_a_w": jax.random.uniform(k[0], (vocab_size, H), jnp.float32, -0.1, 0.1),
        "emb_c_w": jax.random.uniform(k[1], (feature_size, H), jnp.float32, -0.1, 0.1),
        "fc_w": jax.random.uniform(k[2], (E, 2 * H), jnp.float32, -r, r),
        "fc_b": jnp.zeros((E,), jnp.float32),
    }
    params = prepare_word_kv_params(raw["emb_a_w"], raw["emb_c_w"],
                                    raw["fc_w"], raw["fc_b"])

    captions = jax.random.randint(k[3], (B, L), 0, vocab_size)
    targets_feature = jax.random.randint(k[4], (B, L), 0, feature_size)
    hidden_state = jax.random.normal(k[5], (B, S, H), dtype=jnp.float32)
    feature_mask = jax.random.randint(k[6], (B, S, L), 0, 3).astype(jnp.float32)

    out = word_kv_memory_forward(params, captions, hidden_state,
                                 targets_feature, feature_mask,
                                 no_txtnorm=False)
    out = jax.block_until_ready(out)

    ref = _reference_forward(raw, captions, hidden_state,
                             targets_feature, feature_mask, no_txtnorm=False)

    assert out.shape == (B, S, E), out.shape
    max_err = float(jnp.max(jnp.abs(out - ref)))
    # bf16 MXU operands vs. the f32 HIGHEST reference => looser tolerance.
    assert jnp.allclose(out, ref, rtol=3e-2, atol=3e-2), max_err

    print("KERNEL_OK")
</pallas_src>

<mosaic_0001>
module attributes {stable_mosaic.version = 11 : i64} {
  func.func @_word_kv_kernel(%arg0: i32, %arg1: memref<2x8x32xf32, #tpu.memory_space<vmem>>, %arg2: memref<2x8x32xf32, #tpu.memory_space<vmem>>, %arg3: memref<2x8x32xf32, #tpu.memory_space<vmem>>, %arg4: memref<2x8x8xf32, #tpu.memory_space<vmem>>, %arg5: memref<32x128xbf16, #tpu.memory_space<vmem>>, %arg6: memref<32x128xbf16, #tpu.memory_space<vmem>>, %arg7: memref<1x128xf32, #tpu.memory_space<vmem>>, %arg8: memref<2x8x128xf32, #tpu.memory_space<vmem>>) attributes {dimension_semantics = [#tpu.dimension_semantics<parallel>], iteration_bounds = array<i64: 1>, scalar_prefetch = 0 : i64, scratch_operands = 0 : i64, tpu.core_type = #tpu.core_type<tc>, window_params = [{transform_indices = @transform_0, window_bounds = array<i64: 2, 8, 32>}, {transform_indices = @transform_1, window_bounds = array<i64: 2, 8, 32>}, {transform_indices = @transform_2, window_bounds = array<i64: 2, 8, 32>}, {transform_indices = @transform_3, window_bounds = array<i64: 2, 8, 8>}, {pipeline_mode = #tpu.pipeline_mode<synchronous>, transform_indices = @transform_4, window_bounds = array<i64: 32, 128>}, {pipeline_mode = #tpu.pipeline_mode<synchronous>, transform_indices = @transform_5, window_bounds = array<i64: 32, 128>}, {pipeline_mode = #tpu.pipeline_mode<synchronous>, transform_indices = @transform_6, window_bounds = array<i64: 1, 128>}, {transform_indices = @transform_7, window_bounds = array<i64: 2, 8, 128>}]} {
    %c0 = arith.constant 0 : index
    %c0_0 = arith.constant 0 : index
    %c0_1 = arith.constant 0 : index
    %0 = vector.load %arg1[%c0, %c0_0, %c0_1] : memref<2x8x32xf32, #tpu.memory_space<vmem>>, vector<2x8x32xf32>
    %c0_2 = arith.constant 0 : index
    %c0_3 = arith.constant 0 : index
    %c0_4 = arith.constant 0 : index
    %1 = vector.load %arg2[%c0_2, %c0_3, %c0_4] : memref<2x8x32xf32, #tpu.memory_space<vmem>>, vector<2x8x32xf32>
    %c0_5 = arith.constant 0 : index
    %c0_6 = arith.constant 0 : index
    %c0_7 = arith.constant 0 : index
    %2 = vector.load %arg3[%c0_5, %c0_6, %c0_7] : memref<2x8x32xf32, #tpu.memory_space<vmem>>, vector<2x8x32xf32>
    %c0_8 = arith.constant 0 : index
    %c0_9 = arith.constant 0 : index
    %c0_10 = arith.constant 0 : index
    %3 = vector.load %arg4[%c0_8, %c0_9, %c0_10] : memref<2x8x8xf32, #tpu.memory_space<vmem>>, vector<2x8x8xf32>
    %cst = arith.constant 0.000000e+00 : f32
    %cst_11 = arith.constant 1.000000e+00 : f32
    %4 = vector.broadcast %cst : f32 to vector<2x8x8xf32>
    %5 = arith.maximumf %4, %3 : vector<2x8x8xf32>
    %6 = vector.broadcast %cst_11 : f32 to vector<2x8x8xf32>
    %7 = arith.minimumf %6, %5 : vector<2x8x8xf32>
    %8 = arith.truncf %0 : vector<2x8x32xf32> to vector<2x8x32xbf16>
    %9 = arith.truncf %1 : vector<2x8x32xf32> to vector<2x8x32xbf16>
    "tpu.trace_start"() <{level = 10 : i32, message = "bsh,blh->bsl"}> : () -> ()
    %cst_12 = arith.constant dense<0.000000e+00> : vector<2x8x8xf32>
    %10 = tpu.matmul %8, %9, %cst_12 {dimension_numbers = #tpu.dot_dimension_numbers<[2], [2], [1], [1], [0, 0, 0, 1, 1, 1], [0], [0]>} : vector<2x8x32xbf16>, vector<2x8x32xbf16>, vector<2x8x8xf32> -> vector<2x8x8xf32>
    "tpu.trace_stop"() : () -> ()
    %cst_13 = arith.constant dense<0xFF800000> : vector<2x8xf32>
    %11 = vector.multi_reduction <maximumf>, %10, %cst_13 [2] : vector<2x8x8xf32> to vector<2x8xf32>
    %12 = vector.shape_cast %11 : vector<2x8xf32> to vector<2x8x1xf32>
    %cst_14 = arith.constant 0.000000e+00 : f32
    %13 = vector.broadcast %cst_14 : f32 to vector<2x8x1xf32>
    %14 = arith.maximumf %12, %13 : vector<2x8x1xf32>
    %15 = vector.broadcast %14 : vector<2x8x1xf32> to vector<2x8x8xf32>
    %16 = arith.subf %10, %15 : vector<2x8x8xf32>
    %17 = math.exp %16 : vector<2x8x8xf32>
    %18 = arith.mulf %17, %7 : vector<2x8x8xf32>
    %cst_15 = arith.constant dense<0.000000e+00> : vector<2x8xf32>
    %19 = vector.multi_reduction <add>, %18, %cst_15 [2] : vector<2x8x8xf32> to vector<2x8xf32>
    %20 = vector.shape_cast %19 : vector<2x8xf32> to vector<2x8x1xf32>
    %cst_16 = arith.constant 0.000000e+00 : f32
    %21 = vector.broadcast %cst_16 : f32 to vector<2x8x1xf32>
    %22 = arith.subf %21, %14 : vector<2x8x1xf32>
    %23 = math.exp %22 : vector<2x8x1xf32>
    %cst_17 = arith.constant 1.000000e-10 : f32
    %24 = vector.broadcast %cst_17 : f32 to vector<2x8x1xf32>
    %25 = arith.mulf %24, %23 : vector<2x8x1xf32>
    %26 = arith.addf %20, %25 : vector<2x8x1xf32>
    %27 = tpu.reciprocal %26 {approx = true} : vector<2x8x1xf32> -> vector<2x8x1xf32>
    %28 = vector.broadcast %27 : vector<2x8x1xf32> to vector<2x8x8xf32>
    %29 = arith.mulf %18, %28 : vector<2x8x8xf32>
    %30 = arith.truncf %29 : vector<2x8x8xf32> to vector<2x8x8xbf16>
    %31 = arith.truncf %2 : vector<2x8x32xf32> to vector<2x8x32xbf16>
    "tpu.trace_start"() <{level = 10 : i32, message = "bsl,blh->bsh"}> : () -> ()
    %cst_18 = arith.constant dense<0.000000e+00> : vector<2x8x32xf32>
    %32 = tpu.matmul %30, %31, %cst_18 {dimension_numbers = #tpu.dot_dimension_numbers<[2], [1], [1], [2], [0, 0, 0, 1, 1, 2], [0], [0]>} : vector<2x8x8xbf16>, vector<2x8x32xbf16>, vector<2x8x32xf32> -> vector<2x8x32xf32>
    "tpu.trace_stop"() : () -> ()
    %33 = vector.shape_cast %8 : vector<2x8x32xbf16> to vector<16x32xbf16>
    %34 = arith.truncf %32 : vector<2x8x32xf32> to vector<2x8x32xbf16>
    %35 = vector.shape_cast %34 : vector<2x8x32xbf16> to vector<16x32xbf16>
    %c0_19 = arith.constant 0 : index
    %c0_20 = arith.constant 0 : index
    %36 = vector.load %arg5[%c0_19, %c0_20] : memref<32x128xbf16, #tpu.memory_space<vmem>>, vector<32x128xbf16>
    %cst_21 = arith.constant dense<0.000000e+00> : vector<16x128xf32>
    %37 = tpu.matmul %33, %36, %cst_21 {dimension_numbers = #tpu.dot_dimension_numbers<[1], [0], [0], [1], [0, 0, 1, 1], [], []>} : vector<16x32xbf16>, vector<32x128xbf16>, vector<16x128xf32> -> vector<16x128xf32>
    %c0_22 = arith.constant 0 : index
    %c0_23 = arith.constant 0 : index
    %38 = vector.load %arg6[%c0_22, %c0_23] : memref<32x128xbf16, #tpu.memory_space<vmem>>, vector<32x128xbf16>
    %cst_24 = arith.constant dense<0.000000e+00> : vector<16x128xf32>
    %39 = tpu.matmul %35, %38, %cst_24 {dimension_numbers = #tpu.dot_dimension_numbers<[1], [0], [0], [1], [0, 0, 1, 1], [], []>} : vector<16x32xbf16>, vector<32x128xbf16>, vector<16x128xf32> -> vector<16x128xf32>
    %40 = arith.addf %37, %39 : vector<16x128xf32>
    %c0_25 = arith.constant 0 : index
    %c0_26 = arith.constant 0 : index
    %41 = vector.load %arg7[%c0_25, %c0_26] : memref<1x128xf32, #tpu.memory_space<vmem>>, vector<1x128xf32>
    %42 = vector.broadcast %41 : vector<1x128xf32> to vector<16x128xf32>
    %43 = arith.addf %40, %42 : vector<16x128xf32>
    %cst_27 = arith.constant 1.000000e-10 : f32
    %44 = vector.broadcast %cst_27 : f32 to vector<16x128xf32>
    %45 = arith.addf %43, %44 : vector<16x128xf32>
    %46 = vector.extract_strided_slice %45 {offsets = [0, 0], sizes = [16, 32], strides = [1, 1]} : vector<16x128xf32> to vector<16x32xf32>
    %47 = arith.mulf %46, %46 : vector<16x32xf32>
    %cst_28 = arith.constant dense<0.000000e+00> : vector<16xf32>
    %48 = vector.multi_reduction <add>, %47, %cst_28 [1] : vector<16x32xf32> to vector<16xf32>
    %49 = vector.shape_cast %48 : vector<16xf32> to vector<16x1xf32>
    %50 = math.sqrt %49 : vector<16x1xf32>
    %cst_29 = arith.constant 9.99999993E-9 : f32
    %51 = vector.broadcast %cst_29 : f32 to vector<16x1xf32>
    %52 = arith.addf %50, %51 : vector<16x1xf32>
    %53 = tpu.reciprocal %52 {approx = true} : vector<16x1xf32> -> vector<16x1xf32>
    %54 = vector.broadcast %53 : vector<16x1xf32> to vector<16x128xf32>
    %55 = arith.mulf %45, %54 : vector<16x128xf32>
    %56 = vector.shape_cast %55 : vector<16x128xf32> to vector<2x8x128xf32>
    %c0_30 = arith.constant 0 : index
    %c0_31 = arith.constant 0 : index
    %c0_32 = arith.constant 0 : index
    %57 = vector.load %arg8[%c0_30, %c0_31, %c0_32] : memref<2x8x128xf32, #tpu.memory_space<vmem>>, vector<2x8x128xf32>
    tpu.vector_store %arg8[%c0_30, %c0_31, %c0_32], %56 {strides = array<i32>} : memref<2x8x128xf32, #tpu.memory_space<vmem>>, vector<2x8x128xf32>,
    return
  }
  func.func @transform_0(%arg0: i32) -> (i32, i32, i32) {
    %c0_i32 = arith.constant 0 : i32
    %c0_i32_0 = arith.constant 0 : i32
    %c0_i32_1 = arith.constant 0 : i32
    return %arg0, %c0_i32, %c0_i32_0 : i32, i32, i32
  }
  func.func @transform_1(%arg0: i32) -> (i32, i32, i32) {
    %c0_i32 = arith.constant 0 : i32
    %c0_i32_0 = arith.constant 0 : i32
    %c0_i32_1 = arith.constant 0 : i32
    return %arg0, %c0_i32, %c0_i32_0 : i32, i32, i32
  }
  func.func @transform_2(%arg0: i32) -> (i32, i32, i32) {
    %c0_i32 = arith.constant 0 : i32
    %c0_i32_0 = arith.constant 0 : i32
    %c0_i32_1 = arith.constant 0 : i32
    return %arg0, %c0_i32, %c0_i32_0 : i32, i32, i32
  }
  func.func @transform_3(%arg0: i32) -> (i32, i32, i32) {
    %c0_i32 = arith.constant 0 : i32
    %c0_i32_0 = arith.constant 0 : i32
    %c0_i32_1 = arith.constant 0 : i32
    return %arg0, %c0_i32, %c0_i32_0 : i32, i32, i32
  }
  func.func @transform_4(%arg0: i32) -> (i32, i32) {
    %c0_i32 = arith.constant 0 : i32
    %c0_i32_0 = arith.constant 0 : i32
    %c0_i32_1 = arith.constant 0 : i32
    return %c0_i32, %c0_i32_0 : i32, i32
  }
  func.func @transform_5(%arg0: i32) -> (i32, i32) {
    %c0_i32 = arith.constant 0 : i32
    %c0_i32_0 = arith.constant 0 : i32
    %c0_i32_1 = arith.constant 0 : i32
    return %c0_i32, %c0_i32_0 : i32, i32
  }
  func.func @transform_6(%arg0: i32) -> (i32, i32) {
    %c0_i32 = arith.constant 0 : i32
    %c0_i32_0 = arith.constant 0 : i32
    %c0_i32_1 = arith.constant 0 : i32
    return %c0_i32, %c0_i32_0 : i32, i32
  }
  func.func @transform_7(%arg0: i32) -> (i32, i32, i32) {
    %c0_i32 = arith.constant 0 : i32
    %c0_i32_0 = arith.constant 0 : i32
    %c0_i32_1 = arith.constant 0 : i32
    return %arg0, %c0_i32, %c0_i32_0 : i32, i32, i32
  }
}

</mosaic_0001>

<llo_original>
// kernel: tpu_custom_call.1
$region0: #{tpu_custom_call.1}
  #allocation0 [shape = 'u32[]', space=smem, size = 0x4, offset = 0x4, fixed_abs, tag = 'smem constant byte address 0x4 - core index']
  #allocation1 [shape = 'u32[144,128]{1,0:T(1,128)}', space=vmem, size = 0x12000, scoped, tag = 'internal scratch']
  %s0 = inlined_call_operand.hbm [shape: f32[2,8,32], index: 0, kind: input, shape index: {}]
  %s1 = inlined_call_operand.hbm [shape: f32[2,8,32], index: 1, kind: input, shape index: {}]
  %s2 = inlined_call_operand.hbm [shape: f32[2,8,32], index: 2, kind: input, shape index: {}]
  %s3 = inlined_call_operand.hbm [shape: f32[2,8,8], index: 3, kind: input, shape index: {}]
  %s4 = inlined_call_operand.hbm [shape: bf16[32,128], index: 4, kind: input, shape index: {}]
  %s5 = inlined_call_operand.hbm [shape: bf16[32,128], index: 5, kind: input, shape index: {}]
  %s6 = inlined_call_operand.vmem [shape: f32[1,128], index: 6, kind: input, shape index: {}]
  %s7 = inlined_call_operand.hbm [shape: f32[2,8,128], index: 7, kind: output, shape index: {}]
  %s8 = sld [smem:[#allocation0]]
  $region62: #{tpu_custom_call.1} parent=0
    _
  %s10 = ssub.s32 1, %s8
  %s11 = scalar_select 0, %s10, %s8
  $region1: #{tpu_custom_call.1} parent=0
    #allocation2 [shape = 'u8[8192]{0}', space=vmem, size = 0x2000, scoped, tag = 'input window, operand 0, single buffered']
    #allocation3 [shape = 's32[1]{0}', space=sflag, size = 0x4, scoped, tag = 'scoped memory for tpu_custom_call.1']
    #allocation4 [shape = 's32[1]{0}', space=sflag, size = 0x4, scoped, tag = 'scoped memory for tpu_custom_call.1']
    #allocation5 [shape = 'u8[8192]{0}', space=vmem, size = 0x2000, scoped, tag = 'input window, operand 1, single buffered']
    #allocation6 [shape = 's32[1]{0}', space=sflag, size = 0x4, scoped, tag = 'scoped memory for tpu_custom_call.1']
    #allocation7 [shape = 'u8[8192]{0}', space=vmem, size = 0x2000, scoped, tag = 'input window, operand 2, single buffered']
    #allocation8 [shape = 'u8[8192]{0}', space=vmem, size = 0x2000, scoped, tag = 'input window, operand 3, single buffered']
    #allocation9 [shape = 's32[1]{0}', space=sflag, size = 0x4, scoped, tag = 'scoped memory for tpu_custom_call.1']
    #allocation10 [shape = 'u8[8192]{0}', space=vmem, size = 0x2000, scoped, tag = 'input window, operand 4, single buffered']
    #allocation11 [shape = 'u8[8192]{0}', space=vmem, size = 0x2000, scoped, tag = 'input window, operand 5, single buffered']
    #allocation12 [shape = 's32[1]{0}', space=sflag, size = 0x4, scoped, tag = 'scoped memory for tpu_custom_call.1']
    #allocation13 [shape = 'u8[8192]{0}', space=vmem, size = 0x2000, scoped, tag = 'output window, operand 0, single buffered']
    %12 = vsyncpa [#allocation3], 0
    %13 = vsyncpa [#allocation6], 0
    %14 = vsyncpa [#allocation9], 0
    %15 = vsyncpa [#allocation12], 0
    %16 = vsyncpa [#allocation4], 0
    // Predicated region
    $region2: #{tpu_custom_call.1} parent=1 // pred_check
      _
    $region3: #{tpu_custom_call.1} parent=1 // pred_check_branch
      %18 = sbr.rel (0) target = $region5
    $region4: #{tpu_custom_call.1} parent=1 // pred_region
      %s20 = ssub.s32 256, 256
      %21 = vsyncadd [#allocation3], %s20
      %s22 = sshll.u32 [#allocation2], 4
      %s23 = int_to_ptr.vmem [resolvable:$true] %s22
      %28 = dma.hbm_to_vmem [thread:$0]  %s0, 256, %s23, [#allocation3], 128, 128, 8
    $region5: #{tpu_custom_call.1} parent=1 // pred_fallthru
      _
    // Predicated region
    $region6: #{tpu_custom_call.1} parent=1 // pred_check
      _
    $region7: #{tpu_custom_call.1} parent=1 // pred_check_branch
      %30 = sbr.rel (0) target = $region9
    $region8: #{tpu_custom_call.1} parent=1 // pred_region
      %s32 = ssub.s32 256, 256
      %33 = vsyncadd [#allocation6], %s32
      %s34 = sshll.u32 [#allocation5], 4
      %s35 = int_to_ptr.vmem [resolvable:$true] %s34
      %40 = dma.hbm_to_vmem [thread:$0]  %s1, 256, %s35, [#allocation6], 128, 128, 8
    $region9: #{tpu_custom_call.1} parent=1 // pred_fallthru
      _
    // Predicated region
    $region10: #{tpu_custom_call.1} parent=1 // pred_check
      _
    $region11: #{tpu_custom_call.1} parent=1 // pred_check_branch
      %42 = sbr.rel (0) target = $region13
    $region12: #{tpu_custom_call.1} parent=1 // pred_region
      %s44 = ssub.s32 256, 256
      %45 = vsyncadd [#allocation6], %s44
      %s46 = sshll.u32 [#allocation7], 4
      %s47 = int_to_ptr.vmem [resolvable:$true] %s46
      %52 = dma.hbm_to_vmem [thread:$0]  %s2, 256, %s47, [#allocation6], 128, 128, 8
    $region13: #{tpu_custom_call.1} parent=1 // pred_fallthru
      _
    // Predicated region
    $region14: #{tpu_custom_call.1} parent=1 // pred_check
      _
    $region15: #{tpu_custom_call.1} parent=1 // pred_check_branch
      %54 = sbr.rel (0) target = $region17
    $region16: #{tpu_custom_call.1} parent=1 // pred_region
      %s56 = ssub.s32 256, 256
      %57 = vsyncadd [#allocation9], %s56
      %s58 = sshll.u32 [#allocation8], 4
      %s59 = int_to_ptr.vmem [resolvable:$true] %s58
      %64 = dma.hbm_to_vmem [thread:$0]  %s3, 256, %s59, [#allocation9], 128, 128, 8
    $region17: #{tpu_custom_call.1} parent=1 // pred_fallthru
      _
    // Predicated region
    $region18: #{tpu_custom_call.1} parent=1 // pred_check
      _
    $region19: #{tpu_custom_call.1} parent=1 // pred_check_branch
      %66 = sbr.rel (0) target = $region21
    $region20: #{tpu_custom_call.1} parent=1 // pred_region
      %s68 = ssub.s32 256, 256
      %69 = vsyncadd [#allocation9], %s68
      %s70 = sshll.u32 [#allocation10], 4
      %s71 = int_to_ptr.vmem [resolvable:$true] %s70
      %76 = dma.hbm_to_vmem [thread:$0]  %s4, 256, %s71, [#allocation9], 64, 64, 4
    $region21: #{tpu_custom_call.1} parent=1 // pred_fallthru
      _
    // Predicated region
    $region22: #{tpu_custom_call.1} parent=1 // pred_check
      _
    $region23: #{tpu_custom_call.1} parent=1 // pred_check_branch
      %78 = sbr.rel (0) target = $region25
    $region24: #{tpu_custom_call.1} parent=1 // pred_region
      %s80 = ssub.s32 256, 256
      %81 = vsyncadd [#allocation12], %s80
      %s82 = sshll.u32 [#allocation11], 4
      %s83 = int_to_ptr.vmem [resolvable:$true] %s82
      %88 = dma.hbm_to_vmem [thread:$0]  %s5, 256, %s83, [#allocation12], 64, 64, 4
    $region25: #{tpu_custom_call.1} parent=1 // pred_fallthru
      _
    // Predicated region
    $region26: #{tpu_custom_call.1} parent=1 // pred_check
      _
    $region27: #{tpu_custom_call.1} parent=1 // pred_check_branch
      %90 = sbr.rel (0) target = $region29
    $region28: #{tpu_custom_call.1} parent=1 // pred_region
      _
    $region29: #{tpu_custom_call.1} parent=1 // pred_fallthru
      _
    // Predicated region
    $region30: #{tpu_custom_call.1} parent=1 // pred_check
      _
    $region31: #{tpu_custom_call.1} parent=1 // pred_check_branch
      %92 = sbr.rel (0) target = $region33
    $region32: #{tpu_custom_call.1} parent=1 // pred_region
      %93 = dma.done [#allocation3], 256
    $region33: #{tpu_custom_call.1} parent=1 // pred_fallthru
      _
    // Predicated region
    $region34: #{tpu_custom_call.1} parent=1 // pred_check
      _
    $region35: #{tpu_custom_call.1} parent=1 // pred_check_branch
      %95 = sbr.rel (0) target = $region37
    $region36: #{tpu_custom_call.1} parent=1 // pred_region
      %96 = dma.done [#allocation6], 256
    $region37: #{tpu_custom_call.1} parent=1 // pred_fallthru
      _
    // Predicated region
    $region38: #{tpu_custom_call.1} parent=1 // pred_check
      _
    $region39: #{tpu_custom_call.1} parent=1 // pred_check_branch
      %98 = sbr.rel (0) target = $region41
    $region40: #{tpu_custom_call.1} parent=1 // pred_region
      %99 = dma.done [#allocation6], 256
    $region41: #{tpu_custom_call.1} parent=1 // pred_fallthru
      _
    // Predicated region
    $region42: #{tpu_custom_call.1} parent=1 // pred_check
      _
    $region43: #{tpu_custom_call.1} parent=1 // pred_check_branch
      %101 = sbr.rel (0) target = $region45
    $region44: #{tpu_custom_call.1} parent=1 // pred_region
      %102 = dma.done [#allocation9], 256
    $region45: #{tpu_custom_call.1} parent=1 // pred_fallthru
      _
    // Predicated region
    $region46: #{tpu_custom_call.1} parent=1 // pred_check
      _
    $region47: #{tpu_custom_call.1} parent=1 // pred_check_branch
      %104 = sbr.rel (0) target = $region49
    $region48: #{tpu_custom_call.1} parent=1 // pred_region
      %105 = dma.done [#allocation9], 256
    $region49: #{tpu_custom_call.1} parent=1 // pred_fallthru
      _
    // Predicated region
    $region50: #{tpu_custom_call.1} parent=1 // pred_check
      _
    $region51: #{tpu_custom_call.1} parent=1 // pred_check_branch
      %107 = sbr.rel (0) target = $region53
    $region52: #{tpu_custom_call.1} parent=1 // pred_region
      %108 = dma.done [#allocation12], 256
    $region53: #{tpu_custom_call.1} parent=1 // pred_fallthru
      _
    %v110 = vld [vmem:[#allocation2] sm:$0xff]
    %v111 = vld [vmem:[#allocation2 + $0x8] sm:$0xff]
    %v112 = vld [vmem:[#allocation5] sm:$0xff]
    %v113 = vld [vmem:[#allocation5 + $0x8] sm:$0xff]
    %v114 = vld [vmem:[#allocation7] sm:$0xff]
    %v115 = vld [vmem:[#allocation7 + $0x8] sm:$0xff]
    %v116 = vld [vmem:[#allocation8] sm:$0xff]
    %v117 = vld [vmem:[#allocation8 + $0x8] sm:$0xff]
    %v118 = vmax.f32 %v116, 0.0
    %v119 = vmax.f32 %v117, 0.0
    %v120 = vmin.f32 %v118, 1.0
    %v121 = vmin.f32 %v119, 1.0
    %v122 = vpack.c.bf16 %v110, %v110
    %v123 = vpack.c.bf16 %v111, %v111
    %v124 = vpack.c.bf16 %v112, %v112
    %v125 = vpack.c.bf16 %v113, %v113
    %vm126 = vcmask 261120
    %v128 = vsel %vm126, %v122, 0
    %v131 = vsel %vm126, %v124, 0
    %133 = vmatprep.subr.bf16.mxu0 0
    %134 = vmatpush1.bf16.xpose.msra.mxu0 0
    %135 = vmatprep.subr.bf16.mxu0 0
    %136 = vmatpush1.bf16.xpose.msra.mxu0 0
    %137 = vmatprep.subr.bf16.mxu0 0
    %138 = vmatpush1.bf16.xpose.msra.mxu0 0
    %139 = vmatprep.subr.bf16.mxu0 0
    %140 = vmatpush1.bf16.xpose.msra.mxu0 0
    %141 = vmatprep.subr.bf16.mxu0 0
    %142 = vmatpush1.bf16.xpose.msra.mxu0 0
    %143 = vmatprep.subr.bf16.mxu0 0
    %144 = vmatpush1.bf16.xpose.msra.mxu0 0
    %145 = vmatprep.subr.bf16.mxu0 0
    %146 = vmatpush1.bf16.xpose.msra.mxu0 0
    %147 = vmatprep.subr.bf16.mxu0 0
    %148 = vmatpush1.bf16.xpose.msra.mxu0 %v131
    %149 = vmatprep.subr.bf16.mxu0 0
    %150 = vmatpush2.bf16.xpose.msra.mxu0 0
    %151 = vmatprep.subr.bf16.mxu0 0
    %152 = vmatpush2.bf16.xpose.msra.mxu0 0
    %153 = vmatprep.subr.bf16.mxu0 0
    %154 = vmatpush2.bf16.xpose.msra.mxu0 0
    %155 = vmatprep.subr.bf16.mxu0 0
    %156 = vmatpush2.bf16.xpose.msra.mxu0 0
    %157 = vmatprep.subr.bf16.mxu0 0
    %158 = vmatpush2.bf16.xpose.msra.mxu0 0
    %159 = vmatprep.subr.bf16.mxu0 0
    %160 = vmatpush2.bf16.xpose.msra.mxu0 0
    %161 = vmatprep.subr.bf16.mxu0 0
    %162 = vmatpush2.bf16.xpose.msra.mxu0 0
    %163 = vmatprep.subr.bf16.mxu0 0
    %164 = vmatpush2.bf16.xpose.msra.mxu0 0
    %165 = vmatprep.mubr.bf16.mxu0 0
    %166 = vmatmul.mubr.bf16.gmra.mxu0 %v128
    %v167 = vpop.f32.mrf.mxu0
    %v168 = vadd.f32 0.0, %v167
    %v169 = vpop.f32.mrf.mxu0
    %v170 = vpop.f32.mrf.mxu0
    %v171 = vpop.f32.mrf.mxu0
    %172 = vdwg.mxu0
    %v174 = vsel %vm126, %v123, 0
    %v177 = vsel %vm126, %v125, 0
    %179 = vmatprep.subr.bf16.mxu0 0
    %180 = vmatpush1.bf16.xpose.msra.mxu0 0
    %181 = vmatprep.subr.bf16.mxu0 0
    %182 = vmatpush1.bf16.xpose.msra.mxu0 0
    %183 = vmatprep.subr.bf16.mxu0 0
    %184 = vmatpush1.bf16.xpose.msra.mxu0 0
    %185 = vmatprep.subr.bf16.mxu0 0
    %186 = vmatpush1.bf16.xpose.msra.mxu0 0
    %187 = vmatprep.subr.bf16.mxu0 0
    %188 = vmatpush1.bf16.xpose.msra.mxu0 0
    %189 = vmatprep.subr.bf16.mxu0 0
    %190 = vmatpush1.bf16.xpose.msra.mxu0 0
    %191 = vmatprep.subr.bf16.mxu0 0
    %192 = vmatpush1.bf16.xpose.msra.mxu0 0
    %193 = vmatprep.subr.bf16.mxu0 0
    %194 = vmatpush1.bf16.xpose.msra.mxu0 %v177
    %195 = vmatprep.subr.bf16.mxu0 0
    %196 = vmatpush2.bf16.xpose.msra.mxu0 0
    %197 = vmatprep.subr.bf16.mxu0 0
    %198 = vmatpush2.bf16.xpose.msra.mxu0 0
    %199 = vmatprep.subr.bf16.mxu0 0
    %200 = vmatpush2.bf16.xpose.msra.mxu0 0
    %201 = vmatprep.subr.bf16.mxu0 0
    %202 = vmatpush2.bf16.xpose.msra.mxu0 0
    %203 = vmatprep.subr.bf16.mxu0 0
    %204 = vmatpush2.bf16.xpose.msra.mxu0 0
    %205 = vmatprep.subr.bf16.mxu0 0
    %206 = vmatpush2.bf16.xpose.msra.mxu0 0
    %207 = vmatprep.subr.bf16.mxu0 0
    %208 = vmatpush2.bf16.xpose.msra.mxu0 0
    %209 = vmatprep.subr.bf16.mxu0 0
    %210 = vmatpush2.bf16.xpose.msra.mxu0 0
    %211 = vmatprep.mubr.bf16.mxu0 0
    %212 = vmatmul.mubr.bf16.gmra.mxu0 %v174
    %v213 = vpop.f32.mrf.mxu0
    %v214 = vadd.f32 0.0, %v213
    %v215 = vpop.f32.mrf.mxu0
    %v216 = vpop.f32.mrf.mxu0
    %v217 = vpop.f32.mrf.mxu0
    %218 = vdwg.mxu0
    %vm219 = vcmask 64512
    %v220 = vsel %vm219, %v168, -inf
    %221 = vmax.xlane.f32.xlu0 %v220
    %v222 = vpop.xlane.xlu0 %221
    %v223 = vsel %vm219, %v214, -inf
    %224 = vmax.xlane.f32.xlu0 %v223
    %v225 = vpop.xlane.xlu0 %224
    %v226 = vmax.f32 %v222, 0.0
    %v227 = vmax.f32 %v225, 0.0
    %v228 = vsub.f32 %v168, %v226
    %v229 = vsub.f32 %v214, %v227
    %v230 = vmul.f32 %v228, 1.442695
    %v231 = vpow.pop %v230
    %v232 = vmul.f32 %v229, 1.442695
    %v233 = vpow.pop %v232
    %v234 = vmul.f32 %v231, %v120
    %v235 = vmul.f32 %v233, %v121
    %v236 = vsel %vm219, %v234, 0.0
    %237 = vadd.xlane.f32.xlu0 %v236
    %v238 = vpop.xlane.xlu0 %237
    %v239 = vsel %vm219, %v235, 0.0
    %240 = vadd.xlane.f32.xlu0 %v239
    %v241 = vpop.xlane.xlu0 %240
    %v242 = vsub.f32 0.0, %v226
    %v243 = vsub.f32 0.0, %v227
    %v244 = vmul.f32 %v242, 1.442695
    %v245 = vpow.pop %v244
    %v246 = vmul.f32 %v243, 1.442695
    %v247 = vpow.pop %v246
    %v248 = vmul.f32 %v245, 1e-10
    %v249 = vmul.f32 %v247, 1e-10
    %v250 = vadd.f32 %v238, %v248
    %v251 = vadd.f32 %v241, %v249
    %v252 = vrcp.pop %v250
    %v253 = vrcp.pop %v251
    %v254 = vmul.f32 %v234, %v252
    %v255 = vmul.f32 %v235, %v253
    %v256 = vpack.c.bf16 %v254, %v254
    %v257 = vpack.c.bf16 %v255, %v255
    %v258 = vpack.c.bf16 %v114, %v114
    %v259 = vpack.c.bf16 %v115, %v115
    %v261 = vsel %vm219, %v256, 0
    %vm263 = vcmask 1043456
    %v265 = vsel %vm263, %v258, 0
    %267 = vmatprep.subr.bf16.mxu0 0
    %268 = vmatpush1.bf16.msra.mxu0 0
    %269 = vmatprep.subr.bf16.mxu0 0
    %270 = vmatpush1.bf16.msra.mxu0 0
    %271 = vmatprep.subr.bf16.mxu0 0
    %272 = vmatpush1.bf16.msra.mxu0 0
    %273 = vmatprep.subr.bf16.mxu0 0
    %274 = vmatpush1.bf16.msra.mxu0 0
    %275 = vmatprep.subr.bf16.mxu0 0
    %276 = vmatpush1.bf16.msra.mxu0 0
    %277 = vmatprep.subr.bf16.mxu0 0
    %278 = vmatpush1.bf16.msra.mxu0 0
    %279 = vmatprep.subr.bf16.mxu0 0
    %280 = vmatpush1.bf16.msra.mxu0 0
    %281 = vmatprep.subr.bf16.mxu0 0
    %282 = vmatpush1.bf16.msra.mxu0 %v265
    %283 = vmatprep.subr.bf16.mxu0 0
    %284 = vmatpush2.bf16.msra.mxu0 0
    %285 = vmatprep.subr.bf16.mxu0 0
    %286 = vmatpush2.bf16.msra.mxu0 0
    %287 = vmatprep.subr.bf16.mxu0 0
    %288 = vmatpush2.bf16.msra.mxu0 0
    %289 = vmatprep.subr.bf16.mxu0 0
    %290 = vmatpush2.bf16.msra.mxu0 0
    %291 = vmatprep.subr.bf16.mxu0 0
    %292 = vmatpush2.bf16.msra.mxu0 0
    %293 = vmatprep.subr.bf16.mxu0 0
    %294 = vmatpush2.bf16.msra.mxu0 0
    %295 = vmatprep.subr.bf16.mxu0 0
    %296 = vmatpush2.bf16.msra.mxu0 0
    %297 = vmatprep.subr.bf16.mxu0 0
    %298 = vmatpush2.bf16.msra.mxu0 0
    %299 = vmatprep.mubr.bf16.mxu0 0
    %300 = vmatmul.mubr.bf16.gmra.mxu0 %v261
    %v301 = vpop.f32.mrf.mxu0
    %v302 = vadd.f32 0.0, %v301
    %v303 = vpop.f32.mrf.mxu0
    %v304 = vpop.f32.mrf.mxu0
    %v305 = vpop.f32.mrf.mxu0
    %306 = vdwg.mxu0
    %v308 = vsel %vm219, %v257, 0
    %v311 = vsel %vm263, %v259, 0
    %313 = vmatprep.subr.bf16.mxu0 0
    %314 = vmatpush1.bf16.msra.mxu0 0
    %315 = vmatprep.subr.bf16.mxu0 0
    %316 = vmatpush1.bf16.msra.mxu0 0
    %317 = vmatprep.subr.bf16.mxu0 0
    %318 = vmatpush1.bf16.msra.mxu0 0
    %319 = vmatprep.subr.bf16.mxu0 0
    %320 = vmatpush1.bf16.msra.mxu0 0
    %321 = vmatprep.subr.bf16.mxu0 0
    %322 = vmatpush1.bf16.msra.mxu0 0
    %323 = vmatprep.subr.bf16.mxu0 0
    %324 = vmatpush1.bf16.msra.mxu0 0
    %325 = vmatprep.subr.bf16.mxu0 0
    %326 = vmatpush1.bf16.msra.mxu0 0
    %327 = vmatprep.subr.bf16.mxu0 0
    %328 = vmatpush1.bf16.msra.mxu0 %v311
    %329 = vmatprep.subr.bf16.mxu0 0
    %330 = vmatpush2.bf16.msra.mxu0 0
    %331 = vmatprep.subr.bf16.mxu0 0
    %332 = vmatpush2.bf16.msra.mxu0 0
    %333 = vmatprep.subr.bf16.mxu0 0
    %334 = vmatpush2.bf16.msra.mxu0 0
    %335 = vmatprep.subr.bf16.mxu0 0
    %336 = vmatpush2.bf16.msra.mxu0 0
    %337 = vmatprep.subr.bf16.mxu0 0
    %338 = vmatpush2.bf16.msra.mxu0 0
    %339 = vmatprep.subr.bf16.mxu0 0
    %340 = vmatpush2.bf16.msra.mxu0 0
    %341 = vmatprep.subr.bf16.mxu0 0
    %342 = vmatpush2.bf16.msra.mxu0 0
    %343 = vmatprep.subr.bf16.mxu0 0
    %344 = vmatpush2.bf16.msra.mxu0 0
    %345 = vmatprep.mubr.bf16.mxu0 0
    %346 = vmatmul.mubr.bf16.gmra.mxu0 %v308
    %v347 = vpop.f32.mrf.mxu0
    %v348 = vadd.f32 0.0, %v347
    %v349 = vpop.f32.mrf.mxu0
    %v350 = vpop.f32.mrf.mxu0
    %v351 = vpop.f32.mrf.mxu0
    %352 = vdwg.mxu0
    %v353 = vpack.c.bf16 %v302, %v302
    %v354 = vpack.c.bf16 %v348, %v348
    %v355 = vld [vmem:[#allocation10] sm:$0xf]
    %v356 = vld [vmem:[#allocation10 + $0x4] sm:$0xf]
    %v357 = vld [vmem:[#allocation10 + $0x8] sm:$0xf]
    %v358 = vld [vmem:[#allocation10 + $0xc] sm:$0xf]
    %v359 = vld [vmem:[#allocation11] sm:$0xf]
    %v360 = vld [vmem:[#allocation11 + $0x4] sm:$0xf]
    %v361 = vld [vmem:[#allocation11 + $0x8] sm:$0xf]
    %v362 = vld [vmem:[#allocation11 + $0xc] sm:$0xf]
    %v365 = vunpack.c.l.b16 %v353
    %v366 = vunpack.c.l.b16 %v354
    %v367 = vpack.c.b16 %v366, %v365
    %v372 = vunpack.c.l.b16 %v359
    %v373 = vunpack.c.l.b16 %v360
    %v374 = vunpack.c.l.b16 %v361
    %v375 = vunpack.c.l.b16 %v362
    %v376 = vpack.c.b16 %v373, %v372
    %v377 = vpack.c.b16 %v375, %v374
    %v381 = vsel %vm126, %v367, 0
    %383 = vmatprep.subr.bf16.mxu0 0
    %384 = vmatpush1.bf16.msra.mxu0 0
    %385 = vmatprep.subr.bf16.mxu0 0
    %386 = vmatpush1.bf16.msra.mxu0 0
    %387 = vmatprep.subr.bf16.mxu0 0
    %388 = vmatpush1.bf16.msra.mxu0 0
    %389 = vmatprep.subr.bf16.mxu0 0
    %390 = vmatpush1.bf16.msra.mxu0 0
    %391 = vmatprep.subr.bf16.mxu0 0
    %392 = vmatpush1.bf16.msra.mxu0 0
    %393 = vmatprep.subr.bf16.mxu0 0
    %394 = vmatpush1.bf16.msra.mxu0 0
    %395 = vmatprep.subr.bf16.mxu0 0
    %396 = vmatpush1.bf16.msra.mxu0 %v377
    %397 = vmatprep.subr.bf16.mxu0 0
    %398 = vmatpush1.bf16.msra.mxu0 %v376
    %399 = vmatprep.subr.bf16.mxu0 0
    %400 = vmatpush2.bf16.msra.mxu0 0
    %401 = vmatprep.subr.bf16.mxu0 0
    %402 = vmatpush2.bf16.msra.mxu0 0
    %403 = vmatprep.subr.bf16.mxu0 0
    %404 = vmatpush2.bf16.msra.mxu0 0
    %405 = vmatprep.subr.bf16.mxu0 0
    %406 = vmatpush2.bf16.msra.mxu0 0
    %407 = vmatprep.subr.bf16.mxu0 0
    %408 = vmatpush2.bf16.msra.mxu0 0
    %409 = vmatprep.subr.bf16.mxu0 0
    %410 = vmatpush2.bf16.msra.mxu0 0
    %411 = vmatprep.subr.bf16.mxu0 0
    %412 = vmatpush2.bf16.msra.mxu0 0
    %413 = vmatprep.subr.bf16.mxu0 0
    %414 = vmatpush2.bf16.msra.mxu0 0
    %415 = vmatprep.mubr.bf16.mxu0 0
    %416 = vmatmul.mubr.bf16.gmra.mxu0 %v381
    %v417 = vpop.f32.mrf.mxu0
    %v418 = vadd.f32 0.0, %v417
    %v419 = vpop.f32.mrf.mxu0
    %v420 = vpop.f32.mrf.mxu0
    %v421 = vadd.f32 0.0, %v420
    %v422 = vpop.f32.mrf.mxu0
    %423 = vdwg.mxu0
    %v426 = vunpack.c.l.b16 %v122
    %v427 = vunpack.c.l.b16 %v123
    %v428 = vpack.c.b16 %v427, %v426
    %v433 = vunpack.c.l.b16 %v355
    %v434 = vunpack.c.l.b16 %v356
    %v435 = vunpack.c.l.b16 %v357
    %v436 = vunpack.c.l.b16 %v358
    %v437 = vpack.c.b16 %v434, %v433
    %v438 = vpack.c.b16 %v436, %v435
    %v442 = vsel %vm126, %v428, 0
    %444 = vmatprep.subr.bf16.mxu0 0
    %445 = vmatpush1.bf16.msra.mxu0 0
    %446 = vmatprep.subr.bf16.mxu0 0
    %447 = vmatpush1.bf16.msra.mxu0 0
    %448 = vmatprep.subr.bf16.mxu0 0
    %449 = vmatpush1.bf16.msra.mxu0 0
    %450 = vmatprep.subr.bf16.mxu0 0
    %451 = vmatpush1.bf16.msra.mxu0 0
    %452 = vmatprep.subr.bf16.mxu0 0
    %453 = vmatpush1.bf16.msra.mxu0 0
    %454 = vmatprep.subr.bf16.mxu0 0
    %455 = vmatpush1.bf16.msra.mxu0 0
    %456 = vmatprep.subr.bf16.mxu0 0
    %457 = vmatpush1.bf16.msra.mxu0 %v438
    %458 = vmatprep.subr.bf16.mxu0 0
    %459 = vmatpush1.bf16.msra.mxu0 %v437
    %460 = vmatprep.subr.bf16.mxu0 0
    %461 = vmatpush2.bf16.msra.mxu0 0
    %462 = vmatprep.subr.bf16.mxu0 0
    %463 = vmatpush2.bf16.msra.mxu0 0
    %464 = vmatprep.subr.bf16.mxu0 0
    %465 = vmatpush2.bf16.msra.mxu0 0
    %466 = vmatprep.subr.bf16.mxu0 0
    %467 = vmatpush2.bf16.msra.mxu0 0
    %468 = vmatprep.subr.bf16.mxu0 0
    %469 = vmatpush2.bf16.msra.mxu0 0
    %470 = vmatprep.subr.bf16.mxu0 0
    %471 = vmatpush2.bf16.msra.mxu0 0
    %472 = vmatprep.subr.bf16.mxu0 0
    %473 = vmatpush2.bf16.msra.mxu0 0
    %474 = vmatprep.subr.bf16.mxu0 0
    %475 = vmatpush2.bf16.msra.mxu0 0
    %476 = vmatprep.mubr.bf16.mxu0 0
    %477 = vmatmul.mubr.bf16.gmra.mxu0 %v442
    %v478 = vpop.f32.mrf.mxu0
    %v479 = vadd.f32 %v418, %v478
    %v480 = vpop.f32.mrf.mxu0
    %v481 = vpop.f32.mrf.mxu0
    %v482 = vadd.f32 %v421, %v481
    %v483 = vpop.f32.mrf.mxu0
    %484 = vdwg.mxu0
    %v485 = vld [vmem:[%s6] sm:$0x1]
    %v487 = vlaneseq
    %v488 = vshrl.u32 %v487, 7
    %v489 = vsub.s32 0, %v488
    %v490 = vrot.slane %v485, %v489
    %v492 = vadd.f32 %v479, %v490
    %v493 = vadd.f32 %v482, %v490
    %v494 = vadd.f32 %v492, 1e-10
    %v495 = vadd.f32 %v493, 1e-10
    %v496 = vmul.f32 %v494, %v494
    %v497 = vmul.f32 %v495, %v495
    %v498 = vsel %vm126, %v496, 0.0
    %499 = vadd.xlane.f32.xlu0 %v498
    %v500 = vpop.xlane.xlu0 %499
    %v501 = vsel %vm126, %v497, 0.0
    %502 = vadd.xlane.f32.xlu0 %v501
    %v503 = vpop.xlane.xlu0 %502
    %v504 = vrsqrt.pop %v500
    %v505 = vmul.f32 %v500, %v504
    %vm506 = vcmp.eq.f32.partialorder %v500, inf
    %v507 = vsel %vm506, %v500, %v505
    %vm508 = vcmp.eq.f32.partialorder %v500, 0.0
    %v509 = vand.u32 %v500, 2147483648
    %v510 = vsel %vm508, %v509, %v507
    %v511 = vrsqrt.pop %v503
    %v512 = vmul.f32 %v503, %v511
    %vm513 = vcmp.eq.f32.partialorder %v503, inf
    %v514 = vsel %vm513, %v503, %v512
    %vm515 = vcmp.eq.f32.partialorder %v503, 0.0
    %v516 = vand.u32 %v503, 2147483648
    %v517 = vsel %vm515, %v516, %v514
    %v518 = vadd.f32 %v510, 1e-08
    %v519 = vadd.f32 %v517, 1e-08
    %v520 = vrcp.pop %v518
    %v521 = vrcp.pop %v519
    %v522 = vmul.f32 %v494, %v520
    %v523 = vmul.f32 %v495, %v521
    %524 = vst [vmem:[#allocation13] sm:$0xff] %v522
    %525 = vst [vmem:[#allocation13 + $0x8] sm:$0xff] %v523
    // Predicated region
    $region54: #{tpu_custom_call.1} parent=1 // pred_check
      _
    $region55: #{tpu_custom_call.1} parent=1 // pred_check_branch
      %527 = sbr.rel (0) target = $region57
    $region56: #{tpu_custom_call.1} parent=1 // pred_region
      %s529 = ssub.s32 256, 256
      %530 = vsyncadd [#allocation4], %s529
      %s531 = sshll.u32 [#allocation13], 4
      %s532 = int_to_ptr.vmem [resolvable:$true] %s531
      %537 = dma.vmem_to_hbm [thread:$0]  %s532, 256, %s7, [#allocation4], 128, 128, 8
    $region57: #{tpu_custom_call.1} parent=1 // pred_fallthru
      _
    // Predicated region
    $region58: #{tpu_custom_call.1} parent=1 // pred_check
      _
    $region59: #{tpu_custom_call.1} parent=1 // pred_check_branch
      %539 = sbr.rel (0) target = $region61
    $region60: #{tpu_custom_call.1} parent=1 // pred_region
      %540 = dma.done [#allocation4], 256
    $region61: #{tpu_custom_call.1} parent=1 // pred_fallthru
      _
    %541 = vsyncpa [#allocation3], 1
    %542 = vsyncpa [#allocation6], 1
    %543 = vsyncpa [#allocation9], 1
    %544 = vsyncpa [#allocation12], 1
    %545 = vsyncpa [#allocation4], 1

</llo_original>
